<compile_context>
chip_gen: v7x
topology: tpu7x:2x2x1
jax: 0.10.0
libtpu: 0.0.40
codegen_flags: <defaults>
</compile_context>

<pallas_src>
from functools import partial

import jax
import jax.numpy as jnp
from jax.experimental import pallas as pl
from jax.experimental.pallas import tpu as pltpu

EMB_DIM = 10
STATE_DIM = 4 * EMB_DIM      # 40 = (worker + project) for state + action
HIDDEN = STATE_DIM * 2       # 80
N_WORKER = 1807
N_PROJECT = 2490


def _device_kind() -> str:
    try:
        return jax.devices()[0].device_kind.lower()
    except Exception:  # pragma: no cover - defensive
        return ""


_KIND = _device_kind()
_IS_V7 = ("v7" in _KIND) or ("7x" in _KIND)


def critic_kernel(x_ref, w1_ref, b1_ref, w2_ref, b2_ref, out_ref):
    # x_ref:  (Bt, 40) bf16   gathered features, batch on sublanes in HBM
    # w1_ref: (80, 40) bf16   fc1.weight, PyTorch (out, in) layout (resident)
    # b1_ref: (80, 1)  f32
    # w2_ref: (80, 1)  f32    fc2.weight as a column (resident)
    # b2_ref: (1, 1)   f32
    # out_ref:(1, Bt)  f32    lane-dense value head
    #
    # fc1: contract the two feature axes -> (80, Bt), i.e. batch lands on the
    # lane axis without any HBM-side transpose of the activation.
    h = jax.lax.dot_general(
        w1_ref[...], x_ref[...],
        dimension_numbers=(((1,), (1,)), ((), ())),
        preferred_element_type=jnp.float32,
    )
    h = jnp.maximum(h + b1_ref[...], 0.0)
    # fc2 on the VPU/XLU (elementwise multiply + sublane reduce) -- the MXU
    # would be badly underfilled by a 1-row matmul.
    out_ref[...] = jnp.sum(w2_ref[...] * h, axis=0, keepdims=True) + b2_ref[...]


def init_params(key):
    k = jax.random.split(key, 6)
    worker_tab = jax.random.normal(k[0], (N_WORKER, EMB_DIM), jnp.float32)
    project_tab = jax.random.normal(k[1], (N_PROJECT, EMB_DIM), jnp.float32)
    w1 = jax.random.normal(k[2], (HIDDEN, STATE_DIM), jnp.float32) * 0.2  # (out, in)
    b1 = jax.random.normal(k[3], (HIDDEN,), jnp.float32) * 0.1
    w2 = jax.random.normal(k[4], (1, HIDDEN), jnp.float32) * 0.2          # (out, in)
    b2 = jax.random.normal(k[5], (1,), jnp.float32) * 0.1
    return worker_tab, project_tab, w1, b1, w2, b2


@partial(jax.jit, static_argnames=("block_b",))
def critic_forward(state, action, worker_tab, project_tab, w1, b1, w2, b2,
                   block_b=4096):
    B = state.shape[1]

    # ---- XLA glue: embedding gathers + concat, emitted directly in bf16 ----
    # (the only streamed activation; 80 B/row instead of 160 B/row of f32,
    #  and no transpose / pad passes afterwards)
    worker_bf = worker_tab.astype(jnp.bfloat16)
    project_bf = project_tab.astype(jnp.bfloat16)
    feats = jnp.concatenate(
        [
            jnp.take(worker_bf, state[0], axis=0),
            jnp.take(project_bf, state[1], axis=0),
            jnp.take(worker_bf, action[0], axis=0),
            jnp.take(project_bf, action[1], axis=0),
        ],
        axis=-1,
    )                                   # (B, 40) bf16 -> fed straight to the kernel

    # Batch tile: large for overhead amortization / big DMAs, clamped to B
    # for small batches.  On v7x, keep >= 2 grid steps for mid-size batches
    # so CORE_PARALLEL can put work on both TensorCores.
    Bt = min(block_b, B)
    if _IS_V7 and B > 2 * 128:
        Bt = min(Bt, pl.cdiv(pl.cdiv(B, 2), 128) * 128)
    grid = (pl.cdiv(B, Bt),)            # ragged last block is masked by Pallas

    if _IS_V7 and grid[0] > 1:
        dim_sem = (pltpu.CORE_PARALLEL,)
    else:
        dim_sem = (pltpu.PARALLEL,)

    out = pl.pallas_call(
        critic_kernel,
        out_shape=jax.ShapeDtypeStruct((1, B), jnp.float32),
        grid=grid,
        in_specs=[
            pl.BlockSpec((Bt, STATE_DIM), lambda i: (i, 0)),      # x tile (pipelined)
            pl.BlockSpec((HIDDEN, STATE_DIM), lambda i: (0, 0)),  # fc1.weight (resident)
            pl.BlockSpec((HIDDEN, 1), lambda i: (0, 0)),          # fc1.bias   (resident)
            pl.BlockSpec((HIDDEN, 1), lambda i: (0, 0)),          # fc2.weight column
            pl.BlockSpec((1, 1), lambda i: (0, 0)),               # fc2.bias
        ],
        out_specs=pl.BlockSpec((1, Bt), lambda i: (0, i)),        # lane-dense out tile
        compiler_params=pltpu.CompilerParams(dimension_semantics=dim_sem),
    )(
        feats,
        w1.astype(jnp.bfloat16),
        b1.reshape(HIDDEN, 1),
        w2.reshape(HIDDEN, 1),          # (1, 80) -> (80, 1) column, same values
        b2.reshape(1, 1),
    )

    return out.reshape(B, 1)            # (B, 1) f32, matches PyTorch output shape


if __name__ == "__main__":
    key = jax.random.PRNGKey(0)
    pkey, k1, k2, k3, k4 = jax.random.split(key, 5)
    params = init_params(pkey)

    B = 8
    state = jnp.stack(
        [
            jax.random.randint(k1, (B,), 0, N_WORKER, dtype=jnp.int32),
            jax.random.randint(k2, (B,), 0, N_PROJECT, dtype=jnp.int32),
        ],
        axis=0,
    )   # (2, B)
    action = jnp.stack(
        [
            jax.random.randint(k3, (B,), 0, N_WORKER, dtype=jnp.int32),
            jax.random.randint(k4, (B,), 0, N_PROJECT, dtype=jnp.int32),
        ],
        axis=0,
    )   # (2, B)

    out = critic_forward(state, action, *params)
    jax.block_until_ready(out)

    # Pure-JAX references of the same forward pass.
    worker_tab, project_tab, w1, b1, w2, b2 = params
    x = jnp.concatenate(
        [
            worker_tab[state[0]], project_tab[state[1]],
            worker_tab[action[0]], project_tab[action[1]],
        ],
        axis=-1,
    )

    # (a) Reference with the kernel's dtype policy (bf16 fc1 inputs, f32
    #     accumulate) -- tight tolerance.
    x_bf = x.astype(jnp.bfloat16).astype(jnp.float32)
    w1_bf = w1.astype(jnp.bfloat16).astype(jnp.float32)
    h_bf = jnp.maximum(x_bf @ w1_bf.T + b1, 0.0)
    ref_bf = h_bf @ w2.T + b2

    # (b) Full-f32 reference (original PyTorch module numerics) -- loose
    #     tolerance to allow for the bf16 fc1 inputs.
    h32 = jnp.maximum(x @ w1.T + b1, 0.0)
    ref_f32 = h32 @ w2.T + b2

    assert out.shape == (B, 1)
    assert jnp.allclose(out, ref_bf, atol=1e-3, rtol=1e-3)
    assert jnp.allclose(out, ref_f32, atol=5e-2, rtol=5e-2)
    print("KERNEL_OK")
</pallas_src>

<mosaic_0001>
module attributes {stable_mosaic.version = 11 : i64} {
  func.func @critic_kernel(%arg0: i32, %arg1: memref<8x40xbf16, #tpu.memory_space<vmem>>, %arg2: memref<80x40xbf16, #tpu.memory_space<vmem>>, %arg3: memref<80x1xf32, #tpu.memory_space<vmem>>, %arg4: memref<80x1xf32, #tpu.memory_space<vmem>>, %arg5: memref<1x1xf32, #tpu.memory_space<vmem>>, %arg6: memref<1x8xf32, #tpu.memory_space<vmem>>) attributes {dimension_semantics = [#tpu.dimension_semantics<parallel>], iteration_bounds = array<i64: 1>, scalar_prefetch = 0 : i64, scratch_operands = 0 : i64, tpu.core_type = #tpu.core_type<tc>, window_params = [{transform_indices = @transform_0, window_bounds = array<i64: 8, 40>}, {pipeline_mode = #tpu.pipeline_mode<synchronous>, transform_indices = @transform_1, window_bounds = array<i64: 80, 40>}, {pipeline_mode = #tpu.pipeline_mode<synchronous>, transform_indices = @transform_2, window_bounds = array<i64: 80, 1>}, {pipeline_mode = #tpu.pipeline_mode<synchronous>, transform_indices = @transform_3, window_bounds = array<i64: 80, 1>}, {pipeline_mode = #tpu.pipeline_mode<synchronous>, transform_indices = @transform_4, window_bounds = array<i64: 1, 1>}, {transform_indices = @transform_5, window_bounds = array<i64: 1, 8>}]} {
    %c0 = arith.constant 0 : index
    %c0_0 = arith.constant 0 : index
    %0 = vector.load %arg2[%c0, %c0_0] : memref<80x40xbf16, #tpu.memory_space<vmem>>, vector<80x40xbf16>
    %c0_1 = arith.constant 0 : index
    %c0_2 = arith.constant 0 : index
    %1 = vector.load %arg1[%c0_1, %c0_2] : memref<8x40xbf16, #tpu.memory_space<vmem>>, vector<8x40xbf16>
    %cst = arith.constant dense<0.000000e+00> : vector<80x8xf32>
    %2 = tpu.matmul %0, %1, %cst {dimension_numbers = #tpu.dot_dimension_numbers<[1], [1], [0], [0], [0, 0, 1, 0], [], []>} : vector<80x40xbf16>, vector<8x40xbf16>, vector<80x8xf32> -> vector<80x8xf32>
    %c0_3 = arith.constant 0 : index
    %c0_4 = arith.constant 0 : index
    %3 = vector.load %arg3[%c0_3, %c0_4] : memref<80x1xf32, #tpu.memory_space<vmem>>, vector<80x1xf32>
    %4 = vector.broadcast %3 : vector<80x1xf32> to vector<80x8xf32>
    %5 = arith.addf %2, %4 : vector<80x8xf32>
    %cst_5 = arith.constant 0.000000e+00 : f32
    %6 = vector.broadcast %cst_5 : f32 to vector<80x8xf32>
    %7 = arith.maximumf %5, %6 : vector<80x8xf32>
    %c0_6 = arith.constant 0 : index
    %c0_7 = arith.constant 0 : index
    %8 = vector.load %arg4[%c0_6, %c0_7] : memref<80x1xf32, #tpu.memory_space<vmem>>, vector<80x1xf32>
    %9 = vector.broadcast %8 : vector<80x1xf32> to vector<80x8xf32>
    %10 = arith.mulf %9, %7 : vector<80x8xf32>
    %cst_8 = arith.constant dense<0.000000e+00> : vector<8xf32>
    %11 = vector.multi_reduction <add>, %10, %cst_8 [0] : vector<80x8xf32> to vector<8xf32>
    %12 = vector.shape_cast %11 : vector<8xf32> to vector<1x8xf32>
    %c0_9 = arith.constant 0 : index
    %c0_10 = arith.constant 0 : index
    %13 = vector.load %arg5[%c0_9, %c0_10] : memref<1x1xf32, #tpu.memory_space<vmem>>, vector<1x1xf32>
    %14 = vector.broadcast %13 : vector<1x1xf32> to vector<1x8xf32>
    %15 = arith.addf %12, %14 : vector<1x8xf32>
    %c0_11 = arith.constant 0 : index
    %c0_12 = arith.constant 0 : index
    %16 = vector.load %arg6[%c0_11, %c0_12] : memref<1x8xf32, #tpu.memory_space<vmem>>, vector<1x8xf32>
    tpu.vector_store %arg6[%c0_11, %c0_12], %15 {strides = array<i32>} : memref<1x8xf32, #tpu.memory_space<vmem>>, vector<1x8xf32>,
    return
  }
  func.func @transform_0(%arg0: i32) -> (i32, i32) {
    %c0_i32 = arith.constant 0 : i32
    %c0_i32_0 = arith.constant 0 : i32
    return %arg0, %c0_i32 : i32, i32
  }
  func.func @transform_1(%arg0: i32) -> (i32, i32) {
    %c0_i32 = arith.constant 0 : i32
    %c0_i32_0 = arith.constant 0 : i32
    %c0_i32_1 = arith.constant 0 : i32
    return %c0_i32, %c0_i32_0 : i32, i32
  }
  func.func @transform_2(%arg0: i32) -> (i32, i32) {
    %c0_i32 = arith.constant 0 : i32
    %c0_i32_0 = arith.constant 0 : i32
    %c0_i32_1 = arith.constant 0 : i32
    return %c0_i32, %c0_i32_0 : i32, i32
  }
  func.func @transform_3(%arg0: i32) -> (i32, i32) {
    %c0_i32 = arith.constant 0 : i32
    %c0_i32_0 = arith.constant 0 : i32
    %c0_i32_1 = arith.constant 0 : i32
    return %c0_i32, %c0_i32_0 : i32, i32
  }
  func.func @transform_4(%arg0: i32) -> (i32, i32) {
    %c0_i32 = arith.constant 0 : i32
    %c0_i32_0 = arith.constant 0 : i32
    %c0_i32_1 = arith.constant 0 : i32
    return %c0_i32, %c0_i32_0 : i32, i32
  }
  func.func @transform_5(%arg0: i32) -> (i32, i32) {
    %c0_i32 = arith.constant 0 : i32
    %c0_i32_0 = arith.constant 0 : i32
    return %c0_i32, %arg0 : i32, i32
  }
}

</mosaic_0001>

<llo_original>
// kernel: critic_forward.1
$region0: #{critic_forward.1}
  #allocation0 [shape = 'u32[]', space=smem, size = 0x4, offset = 0x4, fixed_abs, tag = 'smem constant byte address 0x4 - core index']
  #allocation1 [shape = 'u32[144,128]{1,0:T(1,128)}', space=vmem, size = 0x12000, scoped, tag = 'internal scratch']
  #allocation2 [shape = 'f32[1,1]{1,0:T(1,128)S(1)}', space=vmem, size = 0x200, scoped, tag = 'scoped memory for critic_forward.1']
  %s0 = inlined_call_operand.vmem [shape: bf16[8,40], index: 0, kind: input, shape index: {}]
  %s1 = inlined_call_operand.vmem [shape: bf16[80,40], index: 1, kind: input, shape index: {}]
  %s2 = inlined_call_operand.vmem [shape: f32[80,1], index: 2, kind: input, shape index: {}]
  %s3 = inlined_call_operand.vmem [shape: f32[80,1], index: 3, kind: input, shape index: {}]
  %s4 = inlined_call_operand.<no memory space> [shape: f32[1,1], index: 4, kind: input, shape index: {}]
  %s5 = inlined_call_operand.hbm [shape: f32[1,8], index: 5, kind: output, shape index: {}]
  %s6 = sld [smem:[#allocation0]]
  $region30: #{critic_forward.1} parent=0
    _
  %s8 = ssub.s32 1, %s6
  %s9 = scalar_select 0, %s8, %s6
  %v10 = vstv %s4
  %11 = vst [vmem:[#allocation2] sm:$0x1] %v10
  $region1: #{critic_forward.1} parent=0
    #allocation3 [shape = 'u8[512]{0}', space=vmem, size = 0x400, scoped, tag = 'output window, operand 0, single buffered']
    #allocation4 [shape = 's32[1]{0}', space=sflag, size = 0x4, scoped, tag = 'scoped memory for critic_forward.1']
    %12 = vsyncpa [#allocation4], 0
    // Predicated region
    $region2: #{critic_forward.1} parent=1 // pred_check
      _
    $region3: #{critic_forward.1} parent=1 // pred_check_branch
      %14 = sbr.rel (0) target = $region5
    $region4: #{critic_forward.1} parent=1 // pred_region
      _
    $region5: #{critic_forward.1} parent=1 // pred_fallthru
      _
    // Predicated region
    $region6: #{critic_forward.1} parent=1 // pred_check
      _
    $region7: #{critic_forward.1} parent=1 // pred_check_branch
      %16 = sbr.rel (0) target = $region9
    $region8: #{critic_forward.1} parent=1 // pred_region
      _
    $region9: #{critic_forward.1} parent=1 // pred_fallthru
      _
    // Predicated region
    $region10: #{critic_forward.1} parent=1 // pred_check
      _
    $region11: #{critic_forward.1} parent=1 // pred_check_branch
      %18 = sbr.rel (0) target = $region13
    $region12: #{critic_forward.1} parent=1 // pred_region
      _
    $region13: #{critic_forward.1} parent=1 // pred_fallthru
      _
    // Predicated region
    $region14: #{critic_forward.1} parent=1 // pred_check
      _
    $region15: #{critic_forward.1} parent=1 // pred_check_branch
      %20 = sbr.rel (0) target = $region17
    $region16: #{critic_forward.1} parent=1 // pred_region
      _
    $region17: #{critic_forward.1} parent=1 // pred_fallthru
      _
    // Predicated region
    $region18: #{critic_forward.1} parent=1 // pred_check
      _
    $region19: #{critic_forward.1} parent=1 // pred_check_branch
      %22 = sbr.rel (0) target = $region21
    $region20: #{critic_forward.1} parent=1 // pred_region
      _
    $region21: #{critic_forward.1} parent=1 // pred_fallthru
      _
    %v24 = vld [vmem:[%s1] sm:$0xf]
    %v25 = vld [vmem:[%s1 + $0x4] sm:$0xf]
    %v26 = vld [vmem:[%s1 + $0x8] sm:$0xf]
    %v27 = vld [vmem:[%s1 + $0xc] sm:$0xf]
    %v28 = vld [vmem:[%s1 + $0x10] sm:$0xf]
    %v29 = vld [vmem:[%s1 + $0x14] sm:$0xf]
    %v30 = vld [vmem:[%s1 + $0x18] sm:$0xf]
    %v31 = vld [vmem:[%s1 + $0x1c] sm:$0xf]
    %v32 = vld [vmem:[%s1 + $0x20] sm:$0xf]
    %v33 = vld [vmem:[%s1 + $0x24] sm:$0xf]
    %v34 = vld [vmem:[%s0] sm:$0xf]
    %v35 = vld [vmem:[%s2] sm:$0xff]
    %v36 = vld [vmem:[%s2 + $0x8] sm:$0xff]
    %v37 = vld [vmem:[%s2 + $0x10] sm:$0xff]
    %v38 = vld [vmem:[%s2 + $0x18] sm:$0xff]
    %v39 = vld [vmem:[%s2 + $0x20] sm:$0xff]
    %v40 = vld [vmem:[%s2 + $0x28] sm:$0xff]
    %v41 = vld [vmem:[%s2 + $0x30] sm:$0xff]
    %v42 = vld [vmem:[%s2 + $0x38] sm:$0xff]
    %v43 = vld [vmem:[%s2 + $0x40] sm:$0xff]
    %v44 = vld [vmem:[%s2 + $0x48] sm:$0xff]
    %46 = vset.pattern.permute.xlu0 0
    %47 = vperm.xlu0 %46, %v35
    %v48 = vpop.permute.xlu0 %47
    %51 = vset.pattern.permute.xlu0 0
    %52 = vperm.xlu0 %51, %v36
    %v53 = vpop.permute.xlu0 %52
    %56 = vset.pattern.permute.xlu0 0
    %57 = vperm.xlu0 %56, %v37
    %v58 = vpop.permute.xlu0 %57
    %61 = vset.pattern.permute.xlu0 0
    %62 = vperm.xlu0 %61, %v38
    %v63 = vpop.permute.xlu0 %62
    %66 = vset.pattern.permute.xlu0 0
    %67 = vperm.xlu0 %66, %v39
    %v68 = vpop.permute.xlu0 %67
    %71 = vset.pattern.permute.xlu0 0
    %72 = vperm.xlu0 %71, %v40
    %v73 = vpop.permute.xlu0 %72
    %76 = vset.pattern.permute.xlu0 0
    %77 = vperm.xlu0 %76, %v41
    %v78 = vpop.permute.xlu0 %77
    %81 = vset.pattern.permute.xlu0 0
    %82 = vperm.xlu0 %81, %v42
    %v83 = vpop.permute.xlu0 %82
    %86 = vset.pattern.permute.xlu0 0
    %87 = vperm.xlu0 %86, %v43
    %v88 = vpop.permute.xlu0 %87
    %91 = vset.pattern.permute.xlu0 0
    %92 = vperm.xlu0 %91, %v44
    %v93 = vpop.permute.xlu0 %92
    %v105 = vunpack.c.l.b16 %v24
    %v106 = vunpack.c.l.b16 %v25
    %v107 = vunpack.c.l.b16 %v26
    %v108 = vunpack.c.l.b16 %v27
    %v109 = vunpack.c.l.b16 %v28
    %v110 = vunpack.c.l.b16 %v29
    %v111 = vunpack.c.l.b16 %v30
    %v112 = vunpack.c.l.b16 %v31
    %v113 = vunpack.c.l.b16 %v32
    %v114 = vunpack.c.l.b16 %v33
    %v115 = vpack.c.b16 %v106, %v105
    %v116 = vpack.c.b16 %v108, %v107
    %v117 = vpack.c.b16 %v110, %v109
    %v118 = vpack.c.b16 %v112, %v111
    %v119 = vpack.c.b16 %v114, %v113
    %vm120 = vcmask 326656
    %v122 = vsel %vm120, %v115, 0
    %v125 = vsel %vm120, %v116, 0
    %v128 = vsel %vm120, %v117, 0
    %v131 = vsel %vm120, %v118, 0
    %v134 = vsel %vm120, %v119, 0
    %v137 = vsel %vm120, %v34, 0
    %139 = vmatprep.subr.bf16.mxu0 0
    %140 = vmatpush1.bf16.xpose.msra.mxu0 %v137
    %141 = vmatprep.subr.bf16.mxu0 0
    %142 = vmatpush1.bf16.xpose.msra.mxu0 0
    %143 = vmatprep.subr.bf16.mxu0 0
    %144 = vmatpush1.bf16.xpose.msra.mxu0 0
    %145 = vmatprep.subr.bf16.mxu0 0
    %146 = vmatpush1.bf16.xpose.msra.mxu0 0
    %147 = vmatprep.subr.bf16.mxu0 0
    %148 = vmatpush1.bf16.xpose.msra.mxu0 0
    %149 = vmatprep.subr.bf16.mxu0 0
    %150 = vmatpush1.bf16.xpose.msra.mxu0 0
    %151 = vmatprep.subr.bf16.mxu0 0
    %152 = vmatpush1.bf16.xpose.msra.mxu0 0
    %153 = vmatprep.subr.bf16.mxu0 0
    %154 = vmatpush1.bf16.xpose.msra.mxu0 0
    %155 = vmatprep.subr.bf16.mxu0 0
    %156 = vmatpush1.bf16.xpose.msra.mxu0 0
    %157 = vmatprep.subr.bf16.mxu0 0
    %158 = vmatpush1.bf16.xpose.msra.mxu0 0
    %159 = vmatprep.subr.bf16.mxu0 0
    %160 = vmatpush1.bf16.xpose.msra.mxu0 0
    %161 = vmatprep.subr.bf16.mxu0 0
    %162 = vmatpush1.bf16.xpose.msra.mxu0 0
    %163 = vmatprep.subr.bf16.mxu0 0
    %164 = vmatpush1.bf16.xpose.msra.mxu0 0
    %165 = vmatprep.subr.bf16.mxu0 0
    %166 = vmatpush1.bf16.xpose.msra.mxu0 0
    %167 = vmatprep.subr.bf16.mxu0 0
    %168 = vmatpush1.bf16.xpose.msra.mxu0 0
    %169 = vmatprep.subr.bf16.mxu0 0
    %170 = vmatpush1.bf16.xpose.msra.mxu0 0
    %171 = vmatprep.mubr.bf16.mxu0 0
    %172 = vmatmul.mubr.bf16.gmra.mrb[0].mxu0 %v122
    %v173 = vpop.f32.mrb[0].mxu0
    %v174 = vadd.f32 %v48, %v173
    %v175 = vpop.f32.mrb[0].mxu0
    %v176 = vpop.f32.mrb[0].mxu0
    %v177 = vadd.f32 %v53, %v176
    %v178 = vpop.f32.mrb[0].mxu0
    %179 = vmatprep.mubr.bf16.mxu0 0
    %180 = vmatmul.mubr.bf16.gmra.mrb[0].mxu0 %v125
    %v181 = vpop.f32.mrb[0].mxu0
    %v182 = vadd.f32 %v58, %v181
    %v183 = vpop.f32.mrb[0].mxu0
    %v184 = vpop.f32.mrb[0].mxu0
    %v185 = vadd.f32 %v63, %v184
    %v186 = vpop.f32.mrb[0].mxu0
    %187 = vmatprep.mubr.bf16.mxu0 0
    %188 = vmatmul.mubr.bf16.gmra.mrb[0].mxu0 %v128
    %v189 = vpop.f32.mrb[0].mxu0
    %v190 = vadd.f32 %v68, %v189
    %v191 = vpop.f32.mrb[0].mxu0
    %v192 = vpop.f32.mrb[0].mxu0
    %v193 = vadd.f32 %v73, %v192
    %v194 = vpop.f32.mrb[0].mxu0
    %195 = vmatprep.mubr.bf16.mxu0 0
    %196 = vmatmul.mubr.bf16.gmra.mrb[0].mxu0 %v131
    %v197 = vpop.f32.mrb[0].mxu0
    %v198 = vadd.f32 %v78, %v197
    %v199 = vpop.f32.mrb[0].mxu0
    %v200 = vpop.f32.mrb[0].mxu0
    %v201 = vadd.f32 %v83, %v200
    %v202 = vpop.f32.mrb[0].mxu0
    %203 = vmatprep.mubr.bf16.mxu0 0
    %204 = vmatmul.mubr.bf16.gmra.mrb[0].mxu0 %v134
    %v205 = vpop.f32.mrb[0].mxu0
    %v206 = vadd.f32 %v88, %v205
    %v207 = vpop.f32.mrb[0].mxu0
    %v208 = vpop.f32.mrb[0].mxu0
    %v209 = vadd.f32 %v93, %v208
    %v210 = vpop.f32.mrb[0].mxu0
    %211 = vdwg.mxu0
    %v212 = vmax.f32 %v174, 0.0
    %v213 = vmax.f32 %v177, 0.0
    %v214 = vmax.f32 %v182, 0.0
    %v215 = vmax.f32 %v185, 0.0
    %v216 = vmax.f32 %v190, 0.0
    %v217 = vmax.f32 %v193, 0.0
    %v218 = vmax.f32 %v198, 0.0
    %v219 = vmax.f32 %v201, 0.0
    %v220 = vmax.f32 %v206, 0.0
    %v221 = vmax.f32 %v209, 0.0
    %v222 = vld [vmem:[%s3] sm:$0xff]
    %v223 = vld [vmem:[%s3 + $0x8] sm:$0xff]
    %v224 = vld [vmem:[%s3 + $0x10] sm:$0xff]
    %v225 = vld [vmem:[%s3 + $0x18] sm:$0xff]
    %v226 = vld [vmem:[%s3 + $0x20] sm:$0xff]
    %v227 = vld [vmem:[%s3 + $0x28] sm:$0xff]
    %v228 = vld [vmem:[%s3 + $0x30] sm:$0xff]
    %v229 = vld [vmem:[%s3 + $0x38] sm:$0xff]
    %v230 = vld [vmem:[%s3 + $0x40] sm:$0xff]
    %v231 = vld [vmem:[%s3 + $0x48] sm:$0xff]
    %233 = vset.pattern.permute.xlu0 0
    %234 = vperm.xlu0 %233, %v222
    %v235 = vpop.permute.xlu0 %234
    %238 = vset.pattern.permute.xlu0 0
    %239 = vperm.xlu0 %238, %v223
    %v240 = vpop.permute.xlu0 %239
    %243 = vset.pattern.permute.xlu0 0
    %244 = vperm.xlu0 %243, %v224
    %v245 = vpop.permute.xlu0 %244
    %248 = vset.pattern.permute.xlu0 0
    %249 = vperm.xlu0 %248, %v225
    %v250 = vpop.permute.xlu0 %249
    %253 = vset.pattern.permute.xlu0 0
    %254 = vperm.xlu0 %253, %v226
    %v255 = vpop.permute.xlu0 %254
    %258 = vset.pattern.permute.xlu0 0
    %259 = vperm.xlu0 %258, %v227
    %v260 = vpop.permute.xlu0 %259
    %263 = vset.pattern.permute.xlu0 0
    %264 = vperm.xlu0 %263, %v228
    %v265 = vpop.permute.xlu0 %264
    %268 = vset.pattern.permute.xlu0 0
    %269 = vperm.xlu0 %268, %v229
    %v270 = vpop.permute.xlu0 %269
    %273 = vset.pattern.permute.xlu0 0
    %274 = vperm.xlu0 %273, %v230
    %v275 = vpop.permute.xlu0 %274
    %278 = vset.pattern.permute.xlu0 0
    %279 = vperm.xlu0 %278, %v231
    %v280 = vpop.permute.xlu0 %279
    %v282 = vmul.f32 %v235, %v212
    %v283 = vmul.f32 %v240, %v213
    %v284 = vmul.f32 %v245, %v214
    %v285 = vmul.f32 %v250, %v215
    %v286 = vmul.f32 %v255, %v216
    %v287 = vmul.f32 %v260, %v217
    %v288 = vmul.f32 %v265, %v218
    %v289 = vmul.f32 %v270, %v219
    %v290 = vmul.f32 %v275, %v220
    %v291 = vmul.f32 %v280, %v221
    %vm292 = vcmask 64512
    %v293 = vsel %vm292, %v282, 0.0
    %v294 = vsel %vm292, %v283, 0.0
    %v295 = vadd.f32 %v293, %v294
    %v296 = vsel %vm292, %v284, 0.0
    %v297 = vadd.f32 %v295, %v296
    %v298 = vsel %vm292, %v285, 0.0
    %v299 = vadd.f32 %v297, %v298
    %v300 = vsel %vm292, %v286, 0.0
    %v301 = vadd.f32 %v299, %v300
    %v302 = vsel %vm292, %v287, 0.0
    %v303 = vadd.f32 %v301, %v302
    %v304 = vsel %vm292, %v288, 0.0
    %v305 = vadd.f32 %v303, %v304
    %v306 = vsel %vm292, %v289, 0.0
    %v307 = vadd.f32 %v305, %v306
    %v308 = vsel %vm292, %v290, 0.0
    %v309 = vadd.f32 %v307, %v308
    %v310 = vsel %vm292, %v291, 0.0
    %v311 = vadd.f32 %v309, %v310
    %v312 = vrot.slane %v311, 4
    %v313 = vadd.f32 %v311, %v312
    %v314 = vrot.slane %v313, 2
    %v315 = vadd.f32 %v313, %v314
    %v316 = vrot.slane %v315, 1
    %v317 = vadd.f32 %v315, %v316
    %v318 = vld [vmem:[#allocation2] sm:$0x1]
    %320 = vset.pattern.permute.xlu0 0
    %321 = vperm.xlu0 %320, %v318
    %v322 = vpop.permute.xlu0 %321
    %v324 = vlaneseq
    %v325 = vshrl.u32 %v324, 7
    %v326 = vsub.s32 0, %v325
    %v327 = vrot.slane %v322, %v326
    %v328 = vadd.f32 %v317, %v327
    %vm329 = vcmask 57344
    %330 = vst.msk [vmem:[#allocation3] sm:$0x1] %vm329, %v328
    // Predicated region
    $region22: #{critic_forward.1} parent=1 // pred_check
      _
    $region23: #{critic_forward.1} parent=1 // pred_check_branch
      %332 = sbr.rel (0) target = $region25
    $region24: #{critic_forward.1} parent=1 // pred_region
      %s334 = ssub.s32 16, 16
      %335 = vsyncadd [#allocation4], %s334
      %s337 = sshll.u32 [#allocation3], 4
      %s338 = int_to_ptr.vmem [resolvable:$true] %s337
      %340 = dma.vmem_to_hbm [thread:$0]  %s338, 16, %s5, [#allocation4]
    $region25: #{critic_forward.1} parent=1 // pred_fallthru
      _
    // Predicated region
    $region26: #{critic_forward.1} parent=1 // pred_check
      _
    $region27: #{critic_forward.1} parent=1 // pred_check_branch
      %342 = sbr.rel (0) target = $region29
    $region28: #{critic_forward.1} parent=1 // pred_region
      %343 = dma.done [#allocation4], 16
    $region29: #{critic_forward.1} parent=1 // pred_fallthru
      _
    %344 = vsyncpa [#allocation4], 1

</llo_original>
